<compile_context>
chip_gen: v5e
topology: v5e:2x2
jax: 0.10.0
libtpu: 0.0.40
codegen_flags: <defaults>
</compile_context>

<pallas_src>
import functools

import jax
import jax.numpy as jnp
import numpy as np
from jax.experimental import pallas as pl
from jax.experimental.pallas import tpu as pltpu


# ---------------------------------------------------------------------------
# Phase 1: block-mask prologue (tiny (N, H, W) problem, single program).
# ---------------------------------------------------------------------------
def _blockmask_kernel(maskp_ref, out_ref, *, block_size, H, W):
    maskp = maskp_ref[...]                    # (N, H+2p, W+2p) f32, zero-padded

    # Separable stride-1 max pool: height pass then width pass
    # (2*(k-1) maxima instead of k*k-1 shifted-slice maxima).
    # For even block_size PyTorch trims the last row/col of the pooled output,
    # which is identical to only producing output positions 0..H-1 / 0..W-1.
    rows = maskp[:, 0:H, :]
    for di in range(1, block_size):
        rows = jnp.maximum(rows, maskp[:, di:di + H, :])
    pooled = rows[:, :, 0:W]
    for dj in range(1, block_size):
        pooled = jnp.maximum(pooled, rows[:, :, dj:dj + W])

    block_mask = 1.0 - pooled                 # (N, H, W)

    # Fold the global rescale into the mask once, in f32 (applied per
    # (N, H, W) element here instead of per (N, C, H, W) element later).
    # NOTE: like the PyTorch original, this is inf/NaN if every position drops.
    scale = jnp.float32(block_mask.size) / jnp.sum(block_mask)
    out_ref[...] = block_mask * scale


# ---------------------------------------------------------------------------
# Phase 2: streaming elementwise multiply (the HBM-bandwidth-bound hot path).
# ---------------------------------------------------------------------------
def _scale_mul_kernel(x_ref, m_ref, out_ref):
    # x_ref: (1, tc, thw) in x.dtype;  m_ref: (1, 1, thw) f32 premultiplied mask.
    # Compute in f32, cast once at the store (no bf16 rounding of mask/scale).
    x = x_ref[...].astype(jnp.float32)
    out_ref[...] = (x * m_ref[...]).astype(out_ref.dtype)


def _pick_tile(dim, align, max_elems):
    """Largest divisor of `dim` that is a multiple of `align` and <= max_elems.
    Falls back to the full dim if no aligned divisor exists (small/odd dims)."""
    if dim <= 0 or dim % align != 0:
        return dim
    best = align
    for cand in range(align, min(dim, max_elems) + 1, align):
        if dim % cand == 0:
            best = cand
    return best


def dropblock2d(x, key, drop_prob, block_size, training=True):
    """JAX/Pallas equivalent of DropBlock2D(drop_prob, block_size).forward(x)."""
    if (not training) or drop_prob == 0.0:
        return x

    N, C, H, W = x.shape
    HW = H * W
    gamma = drop_prob / (block_size ** 2)

    # Bernoulli seed mask, matching `torch.rand(N, H, W) < gamma` (different
    # RNG stream, same distribution).  Zero-pad for the stride-1 max pool.
    # TODO(synk): could generate the seed mask in-kernel with pltpu.prng_* to
    # avoid materializing this small array in HBM.
    mask = (jax.random.uniform(key, (N, H, W), dtype=jnp.float32) < gamma
            ).astype(jnp.float32)
    pad = block_size // 2
    maskp = jnp.pad(mask, ((0, 0), (pad, pad), (pad, pad)))

    # --- Phase 1: premultiplied block mask (tiny; single program in VMEM). ---
    prologue = functools.partial(_blockmask_kernel,
                                 block_size=block_size, H=H, W=W)
    pm = pl.pallas_call(
        prologue,
        out_shape=jax.ShapeDtypeStruct((N, H, W), jnp.float32),
        in_specs=[pl.BlockSpec(memory_space=pltpu.MemorySpace.VMEM)],
        out_specs=pl.BlockSpec(memory_space=pltpu.MemorySpace.VMEM),
    )(maskp)
    # Free, contiguous reshape outside the kernel: lane-dense mask (N, 1, H*W).
    pm = pm.reshape(N, 1, HW)

    # --- Phase 2: lane-dense streaming multiply, tiled over (N, C, H*W). ---
    xr = x.reshape(N, C, HW)                  # lane dim H*W (multiple of 128 here)

    # Lane-dense spatial tile (multiple of 128, or full dim if not divisible).
    thw = _pick_tile(HW, 128, 4096)
    # Keep the per-tile x buffer around <= ~2 MiB so (in + out) double-buffers
    # stay well under the 16 MiB scoped default on v5e and 64 MiB VMEM on v7x.
    itemsize = x.dtype.itemsize
    max_tc = max(1, (2 * 1024 * 1024) // (thw * itemsize))
    tc = _pick_tile(C, 8, max_tc) if C % 8 == 0 else C

    grid = (N, C // tc, HW // thw)
    out = pl.pallas_call(
        _scale_mul_kernel,
        out_shape=jax.ShapeDtypeStruct((N, C, HW), x.dtype),
        grid=grid,
        in_specs=[pl.BlockSpec((1, tc, thw), lambda n, ci, hi: (n, ci, hi)),
                  pl.BlockSpec((1, 1, thw), lambda n, ci, hi: (n, 0, hi))],
        out_specs=pl.BlockSpec((1, tc, thw), lambda n, ci, hi: (n, ci, hi)),
        compiler_params=pltpu.CompilerParams(
            dimension_semantics=("parallel", "parallel", "parallel")),
    )(xr, pm)

    return out.reshape(N, C, H, W)


# ---------------------------------------------------------------------------
# Pure-JAX reference mirroring the PyTorch forward (same RNG as the wrapper).
# ---------------------------------------------------------------------------
def _reference(x, key, drop_prob, block_size):
    N, C, H, W = x.shape
    gamma = drop_prob / (block_size ** 2)
    mask = (jax.random.uniform(key, (N, H, W), dtype=jnp.float32) < gamma
            ).astype(jnp.float32)
    pad = block_size // 2
    pooled = jax.lax.reduce_window(
        mask, -jnp.inf, jax.lax.max,
        window_dimensions=(1, block_size, block_size),
        window_strides=(1, 1, 1),
        padding=((0, 0), (pad, pad), (pad, pad)))
    pooled = pooled[:, :H, :W]  # trim for even block_size (no-op for odd)
    block_mask = 1.0 - pooled
    out = x * block_mask[:, None, :, :]
    return out * block_mask.size / jnp.sum(block_mask)


if __name__ == "__main__":
    drop_prob = 0.25
    block_size = 3

    key = jax.random.PRNGKey(0)
    kx, kmask = jax.random.split(key)
    x = jax.random.normal(kx, (2, 4, 16, 16), dtype=jnp.float32)

    out = dropblock2d(x, kmask, drop_prob, block_size, training=True)
    out = jax.block_until_ready(out)

    ref = jax.block_until_ready(_reference(x, kmask, drop_prob, block_size))
    np.testing.assert_allclose(np.asarray(out), np.asarray(ref),
                               rtol=1e-5, atol=1e-5)
    print("KERNEL_OK")
</pallas_src>

<mosaic_0001>
module attributes {stable_mosaic.version = 11 : i64} {
  func.func @_blockmask_kernel(%arg0: memref<2x18x18xf32, #tpu.memory_space<vmem>>, %arg1: memref<2x16x16xf32, #tpu.memory_space<vmem>>) attributes {dimension_semantics = [], scalar_prefetch = 0 : i64, scratch_operands = 0 : i64, tpu.core_type = #tpu.core_type<tc>} {
    %c0 = arith.constant 0 : index
    %c0_0 = arith.constant 0 : index
    %c0_1 = arith.constant 0 : index
    %0 = vector.load %arg0[%c0, %c0_0, %c0_1] : memref<2x18x18xf32, #tpu.memory_space<vmem>>, vector<2x18x18xf32>
    %1 = vector.extract_strided_slice %0 {offsets = [0, 0, 0], sizes = [2, 16, 18], strides = [1, 1, 1]} : vector<2x18x18xf32> to vector<2x16x18xf32>
    %2 = vector.extract_strided_slice %0 {offsets = [0, 1, 0], sizes = [2, 16, 18], strides = [1, 1, 1]} : vector<2x18x18xf32> to vector<2x16x18xf32>
    %3 = arith.maximumf %1, %2 : vector<2x16x18xf32>
    %4 = vector.extract_strided_slice %0 {offsets = [0, 2, 0], sizes = [2, 16, 18], strides = [1, 1, 1]} : vector<2x18x18xf32> to vector<2x16x18xf32>
    %5 = arith.maximumf %3, %4 : vector<2x16x18xf32>
    %6 = vector.extract_strided_slice %5 {offsets = [0, 0, 0], sizes = [2, 16, 16], strides = [1, 1, 1]} : vector<2x16x18xf32> to vector<2x16x16xf32>
    %7 = vector.extract_strided_slice %5 {offsets = [0, 0, 1], sizes = [2, 16, 16], strides = [1, 1, 1]} : vector<2x16x18xf32> to vector<2x16x16xf32>
    %8 = arith.maximumf %6, %7 : vector<2x16x16xf32>
    %9 = vector.extract_strided_slice %5 {offsets = [0, 0, 2], sizes = [2, 16, 16], strides = [1, 1, 1]} : vector<2x16x18xf32> to vector<2x16x16xf32>
    %10 = arith.maximumf %8, %9 : vector<2x16x16xf32>
    %cst = arith.constant 1.000000e+00 : f32
    %11 = vector.broadcast %cst : f32 to vector<2x16x16xf32>
    %12 = arith.subf %11, %10 : vector<2x16x16xf32>
    %13 = vector.shape_cast %12 : vector<2x16x16xf32> to vector<1x2x16x16xf32>
    %cst_2 = arith.constant dense<0.000000e+00> : vector<1xf32>
    %14 = vector.multi_reduction <add>, %13, %cst_2 [1, 2, 3] : vector<1x2x16x16xf32> to vector<1xf32>
    %15 = vector.shape_cast %14 : vector<1xf32> to vector<1x1x1x1xf32>
    %16 = vector.extract %15[0, 0, 0, 0] : f32 from vector<1x1x1x1xf32>
    %cst_3 = arith.constant 5.120000e+02 : f32
    %17 = arith.divf %cst_3, %16 : f32
    %18 = vector.broadcast %17 : f32 to vector<2x16x16xf32>
    %19 = arith.mulf %12, %18 : vector<2x16x16xf32>
    %c0_4 = arith.constant 0 : index
    %c0_5 = arith.constant 0 : index
    %c0_6 = arith.constant 0 : index
    %20 = vector.load %arg1[%c0_4, %c0_5, %c0_6] : memref<2x16x16xf32, #tpu.memory_space<vmem>>, vector<2x16x16xf32>
    tpu.vector_store %arg1[%c0_4, %c0_5, %c0_6], %19 {strides = array<i32>} : memref<2x16x16xf32, #tpu.memory_space<vmem>>, vector<2x16x16xf32>,
    return
  }
}

</mosaic_0001>

<llo_original>
// kernel: tpu_custom_call.1
$region0: #{tpu_custom_call.1}
  #allocation0 [shape = 'u32[]', space=smem, size = 0x4, offset = 0x4, fixed_abs, tag = 'smem constant byte address 0x4 - core index']
  #allocation1 [shape = 'u32[72,128]{1,0:T(1,128)}', space=vmem, size = 0x9000, scoped, tag = 'internal scratch']
  %s0 = inlined_call_operand.vmem [shape: f32[2,18,18], index: 0, kind: input, shape index: {}]
  %s1 = inlined_call_operand.hbm [shape: f32[2,16,16], index: 1, kind: output, shape index: {}]
  %s2 = sld [smem:[#allocation0]]
  $region14: #{tpu_custom_call.1} parent=0
    _
  %s4 = ssub.s32 1, %s2
  %s5 = scalar_select 0, %s4, %s2
  $region1: #{tpu_custom_call.1} parent=0
    #allocation2 [shape = 'u8[16384]{0}', space=vmem, size = 0x4000, scoped, tag = 'output window, operand 0, single buffered']
    #allocation3 [shape = 's32[1]{0}', space=sflag, size = 0x4, scoped, tag = 'scoped memory for tpu_custom_call.1']
    %6 = vsyncpa [#allocation3], 0
    // Predicated region
    $region2: #{tpu_custom_call.1} parent=1 // pred_check
      _
    $region3: #{tpu_custom_call.1} parent=1 // pred_check_branch
      %8 = sbr.rel (0) target = $region5
    $region4: #{tpu_custom_call.1} parent=1 // pred_region
      _
    $region5: #{tpu_custom_call.1} parent=1 // pred_fallthru
      _
    %v9 = vld [vmem:[%s0] sm:$0xff]
    %v10 = vld [vmem:[%s0 + $0x8] sm:$0xff]
    %v11 = vld [vmem:[%s0 + $0x10] sm:$0x3]
    %v12 = vld [vmem:[%s0 + $0x18] sm:$0xff]
    %v13 = vld [vmem:[%s0 + $0x20] sm:$0xff]
    %v14 = vld [vmem:[%s0 + $0x28] sm:$0x3]
    %vm21 = vcmask 1046528
    %v22 = vrot.slane %v9, 1
    %v23 = vrot.slane %v10, 1
    %v24 = vsel %vm21, %v22, %v23
    %v25 = vrot.slane %v11, 1
    %v26 = vsel %vm21, %v23, %v25
    %v27 = vrot.slane %v12, 1
    %v28 = vrot.slane %v13, 1
    %v29 = vsel %vm21, %v27, %v28
    %v30 = vrot.slane %v14, 1
    %v31 = vsel %vm21, %v28, %v30
    %v36 = vmax.f32 %v9, %v24
    %v37 = vmax.f32 %v10, %v26
    %v38 = vmax.f32 %v12, %v29
    %v39 = vmax.f32 %v13, %v31
    %vm40 = vcmask 1045504
    %v41 = vrot.slane %v9, 2
    %v42 = vrot.slane %v10, 2
    %v43 = vsel %vm40, %v41, %v42
    %v44 = vrot.slane %v11, 2
    %v45 = vsel %vm40, %v42, %v44
    %v46 = vrot.slane %v12, 2
    %v47 = vrot.slane %v13, 2
    %v48 = vsel %vm40, %v46, %v47
    %v49 = vrot.slane %v14, 2
    %v50 = vsel %vm40, %v47, %v49
    %v55 = vmax.f32 %v36, %v43
    %v56 = vmax.f32 %v37, %v45
    %v57 = vmax.f32 %v38, %v48
    %v58 = vmax.f32 %v39, %v50
    %63 = vrot.lane.b32.xlu0 %v55, 127
    %v64 = vpop.permute.xlu0 %63
    %65 = vrot.lane.b32.xlu0 %v56, 127
    %v66 = vpop.permute.xlu0 %65
    %67 = vrot.lane.b32.xlu0 %v57, 127
    %v68 = vpop.permute.xlu0 %67
    %69 = vrot.lane.b32.xlu0 %v58, 127
    %v70 = vpop.permute.xlu0 %69
    %v75 = vmax.f32 %v55, %v64
    %v76 = vmax.f32 %v56, %v66
    %v77 = vmax.f32 %v57, %v68
    %v78 = vmax.f32 %v58, %v70
    %79 = vrot.lane.b32.xlu0 %v55, 126
    %v80 = vpop.permute.xlu0 %79
    %81 = vrot.lane.b32.xlu0 %v56, 126
    %v82 = vpop.permute.xlu0 %81
    %83 = vrot.lane.b32.xlu0 %v57, 126
    %v84 = vpop.permute.xlu0 %83
    %85 = vrot.lane.b32.xlu0 %v58, 126
    %v86 = vpop.permute.xlu0 %85
    %v91 = vmax.f32 %v75, %v80
    %v92 = vmax.f32 %v76, %v82
    %v93 = vmax.f32 %v77, %v84
    %v94 = vmax.f32 %v78, %v86
    %v95 = vsub.f32 1.0, %v91
    %v96 = vsub.f32 1.0, %v92
    %v97 = vsub.f32 1.0, %v93
    %v98 = vsub.f32 1.0, %v94
    %vm99 = vcmask 130048
    %v100 = vsel %vm99, %v95, 0.0
    %v101 = vsel %vm99, %v96, 0.0
    %v102 = vadd.f32 %v100, %v101
    %v103 = vsel %vm99, %v97, 0.0
    %v104 = vadd.f32 %v102, %v103
    %v105 = vsel %vm99, %v98, 0.0
    %v106 = vadd.f32 %v104, %v105
    %107 = vadd.xlane.f32.xlu0 %v106
    %v108 = vpop.xlane.xlu0 %107
    %v109 = vrot.slane %v108, 4
    %v110 = vadd.f32 %v108, %v109
    %v111 = vrot.slane %v110, 2
    %v112 = vadd.f32 %v110, %v111
    %v113 = vrot.slane %v112, 1
    %v114 = vadd.f32 %v112, %v113
    %s115 = vtos %v114
    %v116 = vstv %s115
    %v117 = vrcp.pop %v116
    %v118 = vmul.f32 %v116, %v117
    %v119 = vsub.f32 1.0, %v118
    %v120 = vmul.f32 %v117, %v119
    %v121 = vadd.f32 %v117, %v120
    %vm122 = vweird.f32 %v116
    %vm123 = vweird.f32 %v117
    %vm124 = vmor %vm122, %vm123
    %v125 = vsel %vm124, %v117, %v121
    %v126 = vand.u32 2147483647, %v116
    %vm127 = vcmp.eq.f32.partialorder %v126, 8.507059e+37
    %v128 = vand.u32 %v116, 2147483648
    %v129 = vor.u32 1.1754944e-38, %v128
    %v130 = vsel %vm127, %v129, %v125
    %s131 = vtos %v130
    %s132 = smul.f32 512.0, %s131
    %v133 = vstv %s132
    %v134 = vmul.f32 %v95, %v133
    %v135 = vmul.f32 %v96, %v133
    %v136 = vmul.f32 %v97, %v133
    %v137 = vmul.f32 %v98, %v133
    %138 = vst.msk [vmem:[#allocation2] sm:$0xff] %vm99, %v134
    %139 = vst.msk [vmem:[#allocation2 + $0x8] sm:$0xff] %vm99, %v135
    %140 = vst.msk [vmem:[#allocation2 + $0x10] sm:$0xff] %vm99, %v136
    %141 = vst.msk [vmem:[#allocation2 + $0x18] sm:$0xff] %vm99, %v137
    // Predicated region
    $region6: #{tpu_custom_call.1} parent=1 // pred_check
      _
    $region7: #{tpu_custom_call.1} parent=1 // pred_check_branch
      %143 = sbr.rel (0) target = $region9
    $region8: #{tpu_custom_call.1} parent=1 // pred_region
      %145 = vsyncadd [#allocation3], 0
      %s146 = sshll.u32 [#allocation2], 4
      %s147 = int_to_ptr.vmem [resolvable:$true] %s146
      %s148 = sshll.u32 %s1, 4
      %s149 = int_to_ptr.hbm [resolvable:$true] %s148
      %154 = dma.vmem_to_hbm [thread:$0]  %s147, 512, %s149, [#allocation3], 128, 128, 8
    $region9: #{tpu_custom_call.1} parent=1 // pred_fallthru
      _
    // Predicated region
    $region10: #{tpu_custom_call.1} parent=1 // pred_check
      _
    $region11: #{tpu_custom_call.1} parent=1 // pred_check_branch
      %156 = sbr.rel (0) target = $region13
    $region12: #{tpu_custom_call.1} parent=1 // pred_region
      %158 = dma.done [#allocation3], 512
    $region13: #{tpu_custom_call.1} parent=1 // pred_fallthru
      _
    %159 = vsyncpa [#allocation3], 1

</llo_original>
